<compile_context>
chip_gen: v7x
topology: tpu7x:2x2x1
jax: 0.10.0
libtpu: 0.0.40
codegen_flags: <defaults>
</compile_context>

<pallas_src>
import jax
import jax.numpy as jnp
from jax import lax
from jax.experimental import pallas as pl
from jax.experimental.pallas import tpu as pltpu

_OUT_LANES = 128          # lane-dense partial-sum output width
_ROW_TILE_CAP = 512       # max sublane tile for sigma
_COL_TILE_CAP = 1024      # max lane tile for sigma
_MIN_PALLAS_N = 256       # below this, plain XLA fuses better than a kernel


def _round_up(a, b):
    return (a + b - 1) // b * b


def _pick_tile(size, unit, cap):
    """Largest multiple of `unit` that divides `size`, capped at `cap`."""
    best = unit
    d = unit
    limit = min(size, cap)
    while d <= limit:
        if size % d == 0:
            best = d
        d += unit
    return best


def _nll_kernel(err_col_ref, err_row_ref, sigma_ref, out_ref, acc_ref):
    j = pl.program_id(1)

    @pl.when(j == 0)
    def _init():
        acc_ref[...] = jnp.zeros_like(acc_ref)

    # sigma streamed in its native (narrowest) dtype; cast to f32 on the VPU.
    s = sigma_ref[...].astype(jnp.float32)           # (tk, tn)
    er = err_row_ref[...]                            # (1, tn)  f32
    ec = err_col_ref[...]                            # (tk, 1)  f32

    # Quadratic-form contribution of this tile, all on VPU/XLU (no MXU):
    #   row_sums_r = sum_c sigma_rc * err_c          -> (tk, 1)
    #   partial    = sum_r err_r * row_sums_r        -> (1, 1)
    row_sums = jnp.sum(s * er, axis=1, keepdims=True)
    acc_ref[...] += jnp.sum(row_sums * ec, axis=(0, 1), keepdims=True)

    @pl.when(j == pl.num_programs(1) - 1)
    def _store():
        out_ref[...] = jnp.broadcast_to(acc_ref[...], out_ref.shape)


def _quadratic_form_pallas(err, sigma):
    """err^T @ (sigma @ err) with err f32 (N,), sigma (N, N) float dtype."""
    n = err.shape[0]
    rows = _round_up(n, 8)
    cols = _round_up(n, 128)

    # Zero-pad to (8,128)-aligned shapes; padded entries contribute 0.
    err_col = err if rows == n else jnp.pad(err, (0, rows - n))
    err_row = err if cols == n else jnp.pad(err, (0, cols - n))
    sig = sigma
    if (rows, cols) != sigma.shape:
        sig = jnp.pad(sigma, ((0, rows - n), (0, cols - n)))

    err_col = err_col.reshape(rows, 1)
    err_row = err_row.reshape(1, cols)

    tk = _pick_tile(rows, 8, _ROW_TILE_CAP)
    tn = _pick_tile(cols, 128, _COL_TILE_CAP)
    grid = (rows // tk, cols // tn)

    itemsize = jnp.dtype(sig.dtype).itemsize
    cost = pl.CostEstimate(
        flops=2 * rows * cols,
        transcendentals=0,
        bytes_accessed=rows * cols * itemsize
        + (rows + cols) * 4
        + grid[0] * _OUT_LANES * 4,
    )

    partials = pl.pallas_call(
        _nll_kernel,
        out_shape=jax.ShapeDtypeStruct((grid[0], _OUT_LANES), jnp.float32),
        grid=grid,
        in_specs=[
            pl.BlockSpec((tk, 1), lambda i, j: (i, 0)),    # err column stripe
            pl.BlockSpec((1, tn), lambda i, j: (0, j)),    # err row stripe
            pl.BlockSpec((tk, tn), lambda i, j: (i, j)),   # sigma tile (stream)
        ],
        out_specs=pl.BlockSpec((1, _OUT_LANES), lambda i, j: (i, 0)),
        scratch_shapes=[pltpu.VMEM((1, 1), jnp.float32)],
        compiler_params=pltpu.CompilerParams(
            dimension_semantics=("parallel", "arbitrary"),
            vmem_limit_bytes=32 * 1024 * 1024,
        ),
        cost_estimate=cost,
    )(err_col, err_row, sig)

    # One lane-replicated partial per row stripe: add them up (tiny epilogue).
    return jnp.sum(partials[:, 0])


def nll_loss(x, target, sigma, reduction='mean', *, min_pallas_n=_MIN_PALLAS_N):
    """Pallas implementation of NLLLoss.forward(x, target, sigma)."""
    x_b, t_b = jnp.broadcast_arrays(x, target)
    err = (x_b - t_b).reshape(-1).astype(jnp.float32)
    n = err.shape[0]
    if sigma.shape != (n, n):
        raise ValueError(f"sigma must be ({n}, {n}), got {sigma.shape}")

    # Match torch's sigma.float(): only pre-cast when sigma is *wider* than
    # f32; narrower dtypes (bf16/f16) are streamed as-is and cast in-kernel
    # to halve HBM traffic.
    if jnp.dtype(sigma.dtype).itemsize > 4:
        sigma = sigma.astype(jnp.float32)

    if n < min_pallas_n:
        # Tiny problem: pallas_call launch overhead dominates; let XLA fuse it.
        sv = jnp.dot(sigma.astype(jnp.float32), err,
                     precision=lax.Precision.HIGHEST)
        ret = jnp.dot(err, sv, precision=lax.Precision.HIGHEST)
    else:
        ret = _quadratic_form_pallas(err, sigma)

    if reduction == 'none':
        return ret.reshape(1, 1)      # matches the torch.mm (1, 1) result
    # 'mean' and 'sum' of a single-element result are the value itself.
    return ret


if __name__ == "__main__":
    import numpy as np

    key = jax.random.PRNGKey(0)
    k1, k2, k3, k4, k5, k6 = jax.random.split(key, 6)

    # --- Pallas path (N large enough to stream sigma through the grid) ---
    N = 512
    x = jax.random.normal(k1, (N,), dtype=jnp.float32)
    target = jax.random.normal(k2, (N,), dtype=jnp.float32)
    sigma = jax.random.normal(k3, (N, N), dtype=jnp.float32)

    out = jax.block_until_ready(nll_loss(x, target, sigma, reduction='mean'))

    err_np = np.asarray(x, np.float64) - np.asarray(target, np.float64)
    ref = err_np @ (np.asarray(sigma, np.float64) @ err_np)
    assert np.allclose(float(out), ref, rtol=1e-3, atol=1e-1), (float(out), ref)

    out_none = jax.block_until_ready(nll_loss(x, target, sigma, reduction='none'))
    assert out_none.shape == (1, 1)
    assert np.allclose(float(out_none[0, 0]), ref, rtol=1e-3, atol=1e-1)

    # --- small-N: forced through the kernel (exercises zero-padding) and via
    #     the plain-XLA fallback ---
    M = 32
    xs = jax.random.normal(k4, (M,), dtype=jnp.float32)
    ts = jax.random.normal(k5, (M,), dtype=jnp.float32)
    ss = jax.random.normal(k6, (M, M), dtype=jnp.float32)

    out_small_pallas = jax.block_until_ready(nll_loss(xs, ts, ss, min_pallas_n=1))
    out_small_fallbk = jax.block_until_ready(nll_loss(xs, ts, ss))

    errs = np.asarray(xs, np.float64) - np.asarray(ts, np.float64)
    refs = errs @ (np.asarray(ss, np.float64) @ errs)
    assert np.allclose(float(out_small_pallas), refs, rtol=1e-4, atol=1e-2), (
        float(out_small_pallas), refs)
    assert np.allclose(float(out_small_fallbk), refs, rtol=1e-4, atol=1e-2), (
        float(out_small_fallbk), refs)

    print("KERNEL_OK")
</pallas_src>

<mosaic_0001>
module attributes {stable_mosaic.version = 11 : i64} {
  func.func @_nll_kernel(%arg0: i32, %arg1: i32, %arg2: memref<512x1xf32, #tpu.memory_space<vmem>>, %arg3: memref<1x512xf32, #tpu.memory_space<vmem>>, %arg4: memref<512x512xf32, #tpu.memory_space<vmem>>, %arg5: memref<1x128xf32, #tpu.memory_space<vmem>>, %arg6: memref<1x1xf32, #tpu.memory_space<vmem>>) attributes {dimension_semantics = [#tpu.dimension_semantics<parallel>, #tpu.dimension_semantics<arbitrary>], iteration_bounds = array<i64: 1, 1>, scalar_prefetch = 0 : i64, scratch_operands = 1 : i64, tpu.core_type = #tpu.core_type<tc>, window_params = [{transform_indices = @transform_0, window_bounds = array<i64: 512, 1>}, {transform_indices = @transform_1, window_bounds = array<i64: 1, 512>}, {transform_indices = @transform_2, window_bounds = array<i64: 512, 512>}, {transform_indices = @transform_3, window_bounds = array<i64: 1, 128>}]} {
    %c0_i32 = arith.constant 0 : i32
    %0 = arith.cmpi eq, %arg1, %c0_i32 : i32
    %1 = arith.extui %0 : i1 to i32
    %c0_i32_0 = arith.constant 0 : i32
    %2 = arith.cmpi ne, %1, %c0_i32_0 : i32
    scf.if %2 {
      %cst_13 = arith.constant 0.000000e+00 : f32
      %22 = vector.broadcast %cst_13 : f32 to vector<1x1xf32>
      %c0_14 = arith.constant 0 : index
      %c0_15 = arith.constant 0 : index
      %23 = vector.load %arg6[%c0_14, %c0_15] : memref<1x1xf32, #tpu.memory_space<vmem>>, vector<1x1xf32>
      tpu.vector_store %arg6[%c0_14, %c0_15], %22 {strides = array<i32>} : memref<1x1xf32, #tpu.memory_space<vmem>>, vector<1x1xf32>,
    } else {
    }
    %c0 = arith.constant 0 : index
    %c0_1 = arith.constant 0 : index
    %3 = vector.load %arg4[%c0, %c0_1] : memref<512x512xf32, #tpu.memory_space<vmem>>, vector<512x512xf32>
    %c0_2 = arith.constant 0 : index
    %c0_3 = arith.constant 0 : index
    %4 = vector.load %arg3[%c0_2, %c0_3] : memref<1x512xf32, #tpu.memory_space<vmem>>, vector<1x512xf32>
    %c0_4 = arith.constant 0 : index
    %c0_5 = arith.constant 0 : index
    %5 = vector.load %arg2[%c0_4, %c0_5] : memref<512x1xf32, #tpu.memory_space<vmem>>, vector<512x1xf32>
    %6 = vector.broadcast %4 : vector<1x512xf32> to vector<512x512xf32>
    %7 = arith.mulf %3, %6 : vector<512x512xf32>
    %cst = arith.constant dense<0.000000e+00> : vector<512xf32>
    %8 = vector.multi_reduction <add>, %7, %cst [1] : vector<512x512xf32> to vector<512xf32>
    %9 = vector.shape_cast %8 : vector<512xf32> to vector<512x1xf32>
    %c0_6 = arith.constant 0 : index
    %c0_7 = arith.constant 0 : index
    %10 = vector.load %arg6[%c0_6, %c0_7] : memref<1x1xf32, #tpu.memory_space<vmem>>, vector<1x1xf32>
    %11 = arith.mulf %9, %5 : vector<512x1xf32>
    %12 = vector.shape_cast %11 : vector<512x1xf32> to vector<1x512x1xf32>
    %cst_8 = arith.constant dense<0.000000e+00> : vector<1xf32>
    %13 = vector.multi_reduction <add>, %12, %cst_8 [1, 2] : vector<1x512x1xf32> to vector<1xf32>
    %14 = vector.shape_cast %13 : vector<1xf32> to vector<1x1x1xf32>
    %15 = vector.extract %14[0, 0, 0] : f32 from vector<1x1x1xf32>
    %16 = vector.broadcast %15 : f32 to vector<1x1xf32>
    %17 = arith.addf %10, %16 : vector<1x1xf32>
    %c0_9 = arith.constant 0 : index
    %c0_10 = arith.constant 0 : index
    %18 = vector.load %arg6[%c0_9, %c0_10] : memref<1x1xf32, #tpu.memory_space<vmem>>, vector<1x1xf32>
    tpu.vector_store %arg6[%c0_9, %c0_10], %17 {strides = array<i32>} : memref<1x1xf32, #tpu.memory_space<vmem>>, vector<1x1xf32>,
    %c0_i32_11 = arith.constant 0 : i32
    %19 = arith.cmpi eq, %arg1, %c0_i32_11 : i32
    %20 = arith.extui %19 : i1 to i32
    %c0_i32_12 = arith.constant 0 : i32
    %21 = arith.cmpi ne, %20, %c0_i32_12 : i32
    scf.if %21 {
      %c0_13 = arith.constant 0 : index
      %c0_14 = arith.constant 0 : index
      %22 = vector.load %arg6[%c0_13, %c0_14] : memref<1x1xf32, #tpu.memory_space<vmem>>, vector<1x1xf32>
      %23 = vector.shape_cast %22 : vector<1x1xf32> to vector<1x1xf32>
      %24 = vector.broadcast %23 : vector<1x1xf32> to vector<1x128xf32>
      %c0_15 = arith.constant 0 : index
      %c0_16 = arith.constant 0 : index
      %25 = vector.load %arg5[%c0_15, %c0_16] : memref<1x128xf32, #tpu.memory_space<vmem>>, vector<1x128xf32>
      tpu.vector_store %arg5[%c0_15, %c0_16], %24 {strides = array<i32>} : memref<1x128xf32, #tpu.memory_space<vmem>>, vector<1x128xf32>,
    } else {
    }
    return
  }
  func.func @transform_0(%arg0: i32, %arg1: i32) -> (i32, i32) {
    %c0_i32 = arith.constant 0 : i32
    %c0_i32_0 = arith.constant 0 : i32
    return %arg0, %c0_i32 : i32, i32
  }
  func.func @transform_1(%arg0: i32, %arg1: i32) -> (i32, i32) {
    %c0_i32 = arith.constant 0 : i32
    %c0_i32_0 = arith.constant 0 : i32
    return %c0_i32, %arg1 : i32, i32
  }
  func.func @transform_2(%arg0: i32, %arg1: i32) -> (i32, i32) {
    %c0_i32 = arith.constant 0 : i32
    return %arg0, %arg1 : i32, i32
  }
  func.func @transform_3(%arg0: i32, %arg1: i32) -> (i32, i32) {
    %c0_i32 = arith.constant 0 : i32
    %c0_i32_0 = arith.constant 0 : i32
    return %arg0, %c0_i32 : i32, i32
  }
}

</mosaic_0001>

<llo_original>
// kernel: tpu_custom_call.1
$region0: #{tpu_custom_call.1}
  #allocation0 [shape = 'u32[]', space=smem, size = 0x4, offset = 0x4, fixed_abs, tag = 'smem constant byte address 0x4 - core index']
  #allocation1 [shape = 'u32[144,128]{1,0:T(1,128)}', space=vmem, size = 0x12000, scoped, tag = 'internal scratch']
  #allocation2 [shape = 'f32[1,1]{1,0:T(1,128)}', space=vmem, size = 0x200, scoped, tag = 'scratch operand']
  %s0 = inlined_call_operand.vmem [shape: f32[512,1], index: 0, kind: input, shape index: {}]
  %s1 = inlined_call_operand.vmem [shape: f32[1,512], index: 1, kind: input, shape index: {}]
  %s2 = inlined_call_operand.hbm [shape: f32[512,512], index: 2, kind: input, shape index: {}]
  %s3 = inlined_call_operand.hbm [shape: f32[1,128], index: 3, kind: output, shape index: {}]
  %s4 = sld [smem:[#allocation0]]
  $region34: #{tpu_custom_call.1} parent=0
    _
  %s6 = ssub.s32 1, %s4
  %s7 = scalar_select 0, %s6, %s4
  $region1: #{tpu_custom_call.1} parent=0
    #allocation3 [shape = 'u8[1048576]{0}', space=vmem, size = 0x100000, scoped, tag = 'input window, operand 2, single buffered']
    #allocation4 [shape = 's32[1]{0}', space=sflag, size = 0x4, scoped, tag = 'scoped memory for tpu_custom_call.1']
    #allocation5 [shape = 's32[1]{0}', space=sflag, size = 0x4, scoped, tag = 'scoped memory for tpu_custom_call.1']
    #allocation6 [shape = 'u8[512]{0}', space=vmem, size = 0x400, scoped, tag = 'output window, operand 0, single buffered']
    %8 = vsyncpa [#allocation4], 0
    %9 = vsyncpa [#allocation5], 0
    // Predicated region
    $region2: #{tpu_custom_call.1} parent=1 // pred_check
      _
    $region3: #{tpu_custom_call.1} parent=1 // pred_check_branch
      %11 = sbr.rel (0) target = $region5
    $region4: #{tpu_custom_call.1} parent=1 // pred_region
      _
    $region5: #{tpu_custom_call.1} parent=1 // pred_fallthru
      _
    // Predicated region
    $region6: #{tpu_custom_call.1} parent=1 // pred_check
      _
    $region7: #{tpu_custom_call.1} parent=1 // pred_check_branch
      %13 = sbr.rel (0) target = $region9
    $region8: #{tpu_custom_call.1} parent=1 // pred_region
      _
    $region9: #{tpu_custom_call.1} parent=1 // pred_fallthru
      _
    // Predicated region
    $region10: #{tpu_custom_call.1} parent=1 // pred_check
      _
    $region11: #{tpu_custom_call.1} parent=1 // pred_check_branch
      %15 = sbr.rel (0) target = $region13
    $region12: #{tpu_custom_call.1} parent=1 // pred_region
      %s17 = ssub.s32 32768, 32768
      %18 = vsyncadd [#allocation4], %s17
      %s19 = sshll.u32 [#allocation3], 4
      %s20 = int_to_ptr.vmem [resolvable:$true] %s19
      %25 = dma.hbm_to_vmem [thread:$0]  %s2, 32768, %s20, [#allocation4], 512, 512, 32
    $region13: #{tpu_custom_call.1} parent=1 // pred_fallthru
      _
    // Predicated region
    $region14: #{tpu_custom_call.1} parent=1 // pred_check
      _
    $region15: #{tpu_custom_call.1} parent=1 // pred_check_branch
      %27 = sbr.rel (0) target = $region17
    $region16: #{tpu_custom_call.1} parent=1 // pred_region
      %28 = dma.done [#allocation4], 32768
    $region17: #{tpu_custom_call.1} parent=1 // pred_fallthru
      _
    %p29 = scmp.eq.s32.totalorder 0, 0
    // Predicated region
    $region18: #{tpu_custom_call.1} parent=1 // pred_check
      %p30 = pneg %p29
    $region19: #{tpu_custom_call.1} parent=1 // pred_check_branch
      %32 = sbr.rel (%p30) target = $region21
    $region20: #{tpu_custom_call.1} parent=1 // pred_region
      %vm33 = vcmask 0
      %34 = vst.msk [vmem:[#allocation2] sm:$0x1] %vm33, 0.0
    $region21: #{tpu_custom_call.1} parent=1 // pred_fallthru
      _
    %v35 = vld [vmem:[#allocation3] sm:$0xff]
    %v36 = vld [vmem:[#allocation3 + $0x8] sm:$0xff]
    %v37 = vld [vmem:[#allocation3 + $0x10] sm:$0xff]
    %v38 = vld [vmem:[#allocation3 + $0x18] sm:$0xff]
    %v39 = vld [vmem:[#allocation3 + $0x20] sm:$0xff]
    %v40 = vld [vmem:[#allocation3 + $0x28] sm:$0xff]
    %v41 = vld [vmem:[#allocation3 + $0x30] sm:$0xff]
    %v42 = vld [vmem:[#allocation3 + $0x38] sm:$0xff]
    %v43 = vld [vmem:[#allocation3 + $0x40] sm:$0xff]
    %v44 = vld [vmem:[#allocation3 + $0x48] sm:$0xff]
    %v45 = vld [vmem:[#allocation3 + $0x50] sm:$0xff]
    %v46 = vld [vmem:[#allocation3 + $0x58] sm:$0xff]
    %v47 = vld [vmem:[#allocation3 + $0x60] sm:$0xff]
    %v48 = vld [vmem:[#allocation3 + $0x68] sm:$0xff]
    %v49 = vld [vmem:[#allocation3 + $0x70] sm:$0xff]
    %v50 = vld [vmem:[#allocation3 + $0x78] sm:$0xff]
    %v51 = vld [vmem:[#allocation3 + $0x80] sm:$0xff]
    %v52 = vld [vmem:[#allocation3 + $0x88] sm:$0xff]
    %v53 = vld [vmem:[#allocation3 + $0x90] sm:$0xff]
    %v54 = vld [vmem:[#allocation3 + $0x98] sm:$0xff]
    %v55 = vld [vmem:[#allocation3 + $0xa0] sm:$0xff]
    %v56 = vld [vmem:[#allocation3 + $0xa8] sm:$0xff]
    %v57 = vld [vmem:[#allocation3 + $0xb0] sm:$0xff]
    %v58 = vld [vmem:[#allocation3 + $0xb8] sm:$0xff]
    %v59 = vld [vmem:[#allocation3 + $0xc0] sm:$0xff]
    %v60 = vld [vmem:[#allocation3 + $0xc8] sm:$0xff]
    %v61 = vld [vmem:[#allocation3 + $0xd0] sm:$0xff]
    %v62 = vld [vmem:[#allocation3 + $0xd8] sm:$0xff]
    %v63 = vld [vmem:[#allocation3 + $0xe0] sm:$0xff]
    %v64 = vld [vmem:[#allocation3 + $0xe8] sm:$0xff]
    %v65 = vld [vmem:[#allocation3 + $0xf0] sm:$0xff]
    %v66 = vld [vmem:[#allocation3 + $0xf8] sm:$0xff]
    %v67 = vld [vmem:[#allocation3 + $0x100] sm:$0xff]
    %v68 = vld [vmem:[#allocation3 + $0x108] sm:$0xff]
    %v69 = vld [vmem:[#allocation3 + $0x110] sm:$0xff]
    %v70 = vld [vmem:[#allocation3 + $0x118] sm:$0xff]
    %v71 = vld [vmem:[#allocation3 + $0x120] sm:$0xff]
    %v72 = vld [vmem:[#allocation3 + $0x128] sm:$0xff]
    %v73 = vld [vmem:[#allocation3 + $0x130] sm:$0xff]
    %v74 = vld [vmem:[#allocation3 + $0x138] sm:$0xff]
    %v75 = vld [vmem:[#allocation3 + $0x140] sm:$0xff]
    %v76 = vld [vmem:[#allocation3 + $0x148] sm:$0xff]
    %v77 = vld [vmem:[#allocation3 + $0x150] sm:$0xff]
    %v78 = vld [vmem:[#allocation3 + $0x158] sm:$0xff]
    %v79 = vld [vmem:[#allocation3 + $0x160] sm:$0xff]
    %v80 = vld [vmem:[#allocation3 + $0x168] sm:$0xff]
    %v81 = vld [vmem:[#allocation3 + $0x170] sm:$0xff]
    %v82 = vld [vmem:[#allocation3 + $0x178] sm:$0xff]
    %v83 = vld [vmem:[#allocation3 + $0x180] sm:$0xff]
    %v84 = vld [vmem:[#allocation3 + $0x188] sm:$0xff]
    %v85 = vld [vmem:[#allocation3 + $0x190] sm:$0xff]
    %v86 = vld [vmem:[#allocation3 + $0x198] sm:$0xff]
    %v87 = vld [vmem:[#allocation3 + $0x1a0] sm:$0xff]
    %v88 = vld [vmem:[#allocation3 + $0x1a8] sm:$0xff]
    %v89 = vld [vmem:[#allocation3 + $0x1b0] sm:$0xff]
    %v90 = vld [vmem:[#allocation3 + $0x1b8] sm:$0xff]
    %v91 = vld [vmem:[#allocation3 + $0x1c0] sm:$0xff]
    %v92 = vld [vmem:[#allocation3 + $0x1c8] sm:$0xff]
    %v93 = vld [vmem:[#allocation3 + $0x1d0] sm:$0xff]
    %v94 = vld [vmem:[#allocation3 + $0x1d8] sm:$0xff]
    %v95 = vld [vmem:[#allocation3 + $0x1e0] sm:$0xff]
    %v96 = vld [vmem:[#allocation3 + $0x1e8] sm:$0xff]
    %v97 = vld [vmem:[#allocation3 + $0x1f0] sm:$0xff]
    %v98 = vld [vmem:[#allocation3 + $0x1f8] sm:$0xff]
    %v99 = vld [vmem:[#allocation3 + $0x200] sm:$0xff]
    %v100 = vld [vmem:[#allocation3 + $0x208] sm:$0xff]
    %v101 = vld [vmem:[#allocation3 + $0x210] sm:$0xff]
    %v102 = vld [vmem:[#allocation3 + $0x218] sm:$0xff]
    %v103 = vld [vmem:[#allocation3 + $0x220] sm:$0xff]
    %v104 = vld [vmem:[#allocation3 + $0x228] sm:$0xff]
    %v105 = vld [vmem:[#allocation3 + $0x230] sm:$0xff]
    %v106 = vld [vmem:[#allocation3 + $0x238] sm:$0xff]
    %v107 = vld [vmem:[#allocation3 + $0x240] sm:$0xff]
    %v108 = vld [vmem:[#allocation3 + $0x248] sm:$0xff]
    %v109 = vld [vmem:[#allocation3 + $0x250] sm:$0xff]
    %v110 = vld [vmem:[#allocation3 + $0x258] sm:$0xff]
    %v111 = vld [vmem:[#allocation3 + $0x260] sm:$0xff]
    %v112 = vld [vmem:[#allocation3 + $0x268] sm:$0xff]
    %v113 = vld [vmem:[#allocation3 + $0x270] sm:$0xff]
    %v114 = vld [vmem:[#allocation3 + $0x278] sm:$0xff]
    %v115 = vld [vmem:[#allocation3 + $0x280] sm:$0xff]
    %v116 = vld [vmem:[#allocation3 + $0x288] sm:$0xff]
    %v117 = vld [vmem:[#allocation3 + $0x290] sm:$0xff]
    %v118 = vld [vmem:[#allocation3 + $0x298] sm:$0xff]
    %v119 = vld [vmem:[#allocation3 + $0x2a0] sm:$0xff]
    %v120 = vld [vmem:[#allocation3 + $0x2a8] sm:$0xff]
    %v121 = vld [vmem:[#allocation3 + $0x2b0] sm:$0xff]
    %v122 = vld [vmem:[#allocation3 + $0x2b8] sm:$0xff]
    %v123 = vld [vmem:[#allocation3 + $0x2c0] sm:$0xff]
    %v124 = vld [vmem:[#allocation3 + $0x2c8] sm:$0xff]
    %v125 = vld [vmem:[#allocation3 + $0x2d0] sm:$0xff]
    %v126 = vld [vmem:[#allocation3 + $0x2d8] sm:$0xff]
    %v127 = vld [vmem:[#allocation3 + $0x2e0] sm:$0xff]
    %v128 = vld [vmem:[#allocation3 + $0x2e8] sm:$0xff]
    %v129 = vld [vmem:[#allocation3 + $0x2f0] sm:$0xff]
    %v130 = vld [vmem:[#allocation3 + $0x2f8] sm:$0xff]
    %v131 = vld [vmem:[#allocation3 + $0x300] sm:$0xff]
    %v132 = vld [vmem:[#allocation3 + $0x308] sm:$0xff]
    %v133 = vld [vmem:[#allocation3 + $0x310] sm:$0xff]
    %v134 = vld [vmem:[#allocation3 + $0x318] sm:$0xff]
    %v135 = vld [vmem:[#allocation3 + $0x320] sm:$0xff]
    %v136 = vld [vmem:[#allocation3 + $0x328] sm:$0xff]
    %v137 = vld [vmem:[#allocation3 + $0x330] sm:$0xff]
    %v138 = vld [vmem:[#allocation3 + $0x338] sm:$0xff]
    %v139 = vld [vmem:[#allocation3 + $0x340] sm:$0xff]
    %v140 = vld [vmem:[#allocation3 + $0x348] sm:$0xff]
    %v141 = vld [vmem:[#allocation3 + $0x350] sm:$0xff]
    %v142 = vld [vmem:[#allocation3 + $0x358] sm:$0xff]
    %v143 = vld [vmem:[#allocation3 + $0x360] sm:$0xff]
    %v144 = vld [vmem:[#allocation3 + $0x368] sm:$0xff]
    %v145 = vld [vmem:[#allocation3 + $0x370] sm:$0xff]
    %v146 = vld [vmem:[#allocation3 + $0x378] sm:$0xff]
    %v147 = vld [vmem:[#allocation3 + $0x380] sm:$0xff]
    %v148 = vld [vmem:[#allocation3 + $0x388] sm:$0xff]
    %v149 = vld [vmem:[#allocation3 + $0x390] sm:$0xff]
    %v150 = vld [vmem:[#allocation3 + $0x398] sm:$0xff]
    %v151 = vld [vmem:[#allocation3 + $0x3a0] sm:$0xff]
    %v152 = vld [vmem:[#allocation3 + $0x3a8] sm:$0xff]
    %v153 = vld [vmem:[#allocation3 + $0x3b0] sm:$0xff]
    %v154 = vld [vmem:[#allocation3 + $0x3b8] sm:$0xff]
    %v155 = vld [vmem:[#allocation3 + $0x3c0] sm:$0xff]
    %v156 = vld [vmem:[#allocation3 + $0x3c8] sm:$0xff]
    %v157 = vld [vmem:[#allocation3 + $0x3d0] sm:$0xff]
    %v158 = vld [vmem:[#allocation3 + $0x3d8] sm:$0xff]
    %v159 = vld [vmem:[#allocation3 + $0x3e0] sm:$0xff]
    %v160 = vld [vmem:[#allocation3 + $0x3e8] sm:$0xff]
    %v161 = vld [vmem:[#allocation3 + $0x3f0] sm:$0xff]
    %v162 = vld [vmem:[#allocation3 + $0x3f8] sm:$0xff]
    %v163 = vld [vmem:[#allocation3 + $0x400] sm:$0xff]
    %v164 = vld [vmem:[#allocation3 + $0x408] sm:$0xff]
    %v165 = vld [vmem:[#allocation3 + $0x410] sm:$0xff]
    %v166 = vld [vmem:[#allocation3 + $0x418] sm:$0xff]
    %v167 = vld [vmem:[#allocation3 + $0x420] sm:$0xff]
    %v168 = vld [vmem:[#allocation3 + $0x428] sm:$0xff]
    %v169 = vld [vmem:[#allocation3 + $0x430] sm:$0xff]
    %v170 = vld [vmem:[#allocation3 + $0x438] sm:$0xff]
    %v171 = vld [vmem:[#allocation3 + $0x440] sm:$0xff]
    %v172 = vld [vmem:[#allocation3 + $0x448] sm:$0xff]
    %v173 = vld [vmem:[#allocation3 + $0x450] sm:$0xff]
    %v174 = vld [vmem:[#allocation3 + $0x458] sm:$0xff]
    %v175 = vld [vmem:[#allocation3 + $0x460] sm:$0xff]
    %v176 = vld [vmem:[#allocation3 + $0x468] sm:$0xff]
    %v177 = vld [vmem:[#allocation3 + $0x470] sm:$0xff]
    %v178 = vld [vmem:[#allocation3 + $0x478] sm:$0xff]
    %v179 = vld [vmem:[#allocation3 + $0x480] sm:$0xff]
    %v180 = vld [vmem:[#allocation3 + $0x488] sm:$0xff]
    %v181 = vld [vmem:[#allocation3 + $0x490] sm:$0xff]
    %v182 = vld [vmem:[#allocation3 + $0x498] sm:$0xff]
    %v183 = vld [vmem:[#allocation3 + $0x4a0] sm:$0xff]
    %v184 = vld [vmem:[#allocation3 + $0x4a8] sm:$0xff]
    %v185 = vld [vmem:[#allocation3 + $0x4b0] sm:$0xff]
    %v186 = vld [vmem:[#allocation3 + $0x4b8] sm:$0xff]
    %v187 = vld [vmem:[#allocation3 + $0x4c0] sm:$0xff]
    %v188 = vld [vmem:[#allocation3 + $0x4c8] sm:$0xff]
    %v189 = vld [vmem:[#allocation3 + $0x4d0] sm:$0xff]
    %v190 = vld [vmem:[#allocation3 + $0x4d8] sm:$0xff]
    %v191 = vld [vmem:[#allocation3 + $0x4e0] sm:$0xff]
    %v192 = vld [vmem:[#allocation3 + $0x4e8] sm:$0xff]
    %v193 = vld [vmem:[#allocation3 + $0x4f0] sm:$0xff]
    %v194 = vld [vmem:[#allocation3 + $0x4f8] sm:$0xff]
    %v195 = vld [vmem:[#allocation3 + $0x500] sm:$0xff]
    %v196 = vld [vmem:[#allocation3 + $0x508] sm:$0xff]
    %v197 = vld [vmem:[#allocation3 + $0x510] sm:$0xff]
    %v198 = vld [vmem:[#allocation3 + $0x518] sm:$0xff]
    %v199 = vld [vmem:[#allocation3 + $0x520] sm:$0xff]
    %v200 = vld [vmem:[#allocation3 + $0x528] sm:$0xff]
    %v201 = vld [vmem:[#allocation3 + $0x530] sm:$0xff]
    %v202 = vld [vmem:[#allocation3 + $0x538] sm:$0xff]
    %v203 = vld [vmem:[#allocation3 + $0x540] sm:$0xff]
    %v204 = vld [vmem:[#allocation3 + $0x548] sm:$0xff]
    %v205 = vld [vmem:[#allocation3 + $0x550] sm:$0xff]
    %v206 = vld [vmem:[#allocation3 + $0x558] sm:$0xff]
    %v207 = vld [vmem:[#allocation3 + $0x560] sm:$0xff]
    %v208 = vld [vmem:[#allocation3 + $0x568] sm:$0xff]
    %v209 = vld [vmem:[#allocation3 + $0x570] sm:$0xff]
    %v210 = vld [vmem:[#allocation3 + $0x578] sm:$0xff]
    %v211 = vld [vmem:[#allocation3 + $0x580] sm:$0xff]
    %v212 = vld [vmem:[#allocation3 + $0x588] sm:$0xff]
    %v213 = vld [vmem:[#allocation3 + $0x590] sm:$0xff]
    %v214 = vld [vmem:[#allocation3 + $0x598] sm:$0xff]
    %v215 = vld [vmem:[#allocation3 + $0x5a0] sm:$0xff]
    %v216 = vld [vmem:[#allocation3 + $0x5a8] sm:$0xff]
    %v217 = vld [vmem:[#allocation3 + $0x5b0] sm:$0xff]
    %v218 = vld [vmem:[#allocation3 + $0x5b8] sm:$0xff]
    %v219 = vld [vmem:[#allocation3 + $0x5c0] sm:$0xff]
    %v220 = vld [vmem:[#allocation3 + $0x5c8] sm:$0xff]
    %v221 = vld [vmem:[#allocation3 + $0x5d0] sm:$0xff]
    %v222 = vld [vmem:[#allocation3 + $0x5d8] sm:$0xff]
    %v223 = vld [vmem:[#allocation3 + $0x5e0] sm:$0xff]
    %v224 = vld [vmem:[#allocation3 + $0x5e8] sm:$0xff]
    %v225 = vld [vmem:[#allocation3 + $0x5f0] sm:$0xff]
    %v226 = vld [vmem:[#allocation3 + $0x5f8] sm:$0xff]
    %v227 = vld [vmem:[#allocation3 + $0x600] sm:$0xff]
    %v228 = vld [vmem:[#allocation3 + $0x608] sm:$0xff]
    %v229 = vld [vmem:[#allocation3 + $0x610] sm:$0xff]
    %v230 = vld [vmem:[#allocation3 + $0x618] sm:$0xff]
    %v231 = vld [vmem:[#allocation3 + $0x620] sm:$0xff]
    %v232 = vld [vmem:[#allocation3 + $0x628] sm:$0xff]
    %v233 = vld [vmem:[#allocation3 + $0x630] sm:$0xff]
    %v234 = vld [vmem:[#allocation3 + $0x638] sm:$0xff]
    %v235 = vld [vmem:[#allocation3 + $0x640] sm:$0xff]
    %v236 = vld [vmem:[#allocation3 + $0x648] sm:$0xff]
    %v237 = vld [vmem:[#allocation3 + $0x650] sm:$0xff]
    %v238 = vld [vmem:[#allocation3 + $0x658] sm:$0xff]
    %v239 = vld [vmem:[#allocation3 + $0x660] sm:$0xff]
    %v240 = vld [vmem:[#allocation3 + $0x668] sm:$0xff]
    %v241 = vld [vmem:[#allocation3 + $0x670] sm:$0xff]
    %v242 = vld [vmem:[#allocation3 + $0x678] sm:$0xff]
    %v243 = vld [vmem:[#allocation3 + $0x680] sm:$0xff]
    %v244 = vld [vmem:[#allocation3 + $0x688] sm:$0xff]
    %v245 = vld [vmem:[#allocation3 + $0x690] sm:$0xff]
    %v246 = vld [vmem:[#allocation3 + $0x698] sm:$0xff]
    %v247 = vld [vmem:[#allocation3 + $0x6a0] sm:$0xff]
    %v248 = vld [vmem:[#allocation3 + $0x6a8] sm:$0xff]
    %v249 = vld [vmem:[#allocation3 + $0x6b0] sm:$0xff]
    %v250 = vld [vmem:[#allocation3 + $0x6b8] sm:$0xff]
    %v251 = vld [vmem:[#allocation3 + $0x6c0] sm:$0xff]
    %v252 = vld [vmem:[#allocation3 + $0x6c8] sm:$0xff]
    %v253 = vld [vmem:[#allocation3 + $0x6d0] sm:$0xff]
    %v254 = vld [vmem:[#allocation3 + $0x6d8] sm:$0xff]
    %v255 = vld [vmem:[#allocation3 + $0x6e0] sm:$0xff]
    %v256 = vld [vmem:[#allocation3 + $0x6e8] sm:$0xff]
    %v257 = vld [vmem:[#allocation3 + $0x6f0] sm:$0xff]
    %v258 = vld [vmem:[#allocation3 + $0x6f8] sm:$0xff]
    %v259 = vld [vmem:[#allocation3 + $0x700] sm:$0xff]
    %v260 = vld [vmem:[#allocation3 + $0x708] sm:$0xff]
    %v261 = vld [vmem:[#allocation3 + $0x710] sm:$0xff]
    %v262 = vld [vmem:[#allocation3 + $0x718] sm:$0xff]
    %v263 = vld [vmem:[#allocation3 + $0x720] sm:$0xff]
    %v264 = vld [vmem:[#allocation3 + $0x728] sm:$0xff]
    %v265 = vld [vmem:[#allocation3 + $0x730] sm:$0xff]
    %v266 = vld [vmem:[#allocation3 + $0x738] sm:$0xff]
    %v267 = vld [vmem:[#allocation3 + $0x740] sm:$0xff]
    %v268 = vld [vmem:[#allocation3 + $0x748] sm:$0xff]
    %v269 = vld [vmem:[#allocation3 + $0x750] sm:$0xff]
    %v270 = vld [vmem:[#allocation3 + $0x758] sm:$0xff]
    %v271 = vld [vmem:[#allocation3 + $0x760] sm:$0xff]
    %v272 = vld [vmem:[#allocation3 + $0x768] sm:$0xff]
    %v273 = vld [vmem:[#allocation3 + $0x770] sm:$0xff]
    %v274 = vld [vmem:[#allocation3 + $0x778] sm:$0xff]
    %v275 = vld [vmem:[#allocation3 + $0x780] sm:$0xff]
    %v276 = vld [vmem:[#allocation3 + $0x788] sm:$0xff]
    %v277 = vld [vmem:[#allocation3 + $0x790] sm:$0xff]
    %v278 = vld [vmem:[#allocation3 + $0x798] sm:$0xff]
    %v279 = vld [vmem:[#allocation3 + $0x7a0] sm:$0xff]
    %v280 = vld [vmem:[#allocation3 + $0x7a8] sm:$0xff]
    %v281 = vld [vmem:[#allocation3 + $0x7b0] sm:$0xff]
    %v282 = vld [vmem:[#allocation3 + $0x7b8] sm:$0xff]
    %v283 = vld [vmem:[#allocation3 + $0x7c0] sm:$0xff]
    %v284 = vld [vmem:[#allocation3 + $0x7c8] sm:$0xff]
    %v285 = vld [vmem:[#allocation3 + $0x7d0] sm:$0xff]
    %v286 = vld [vmem:[#allocation3 + $0x7d8] sm:$0xff]
    %v287 = vld [vmem:[#allocation3 + $0x7e0] sm:$0xff]
    %v288 = vld [vmem:[#allocation3 + $0x7e8] sm:$0xff]
    %v289 = vld [vmem:[#allocation3 + $0x7f0] sm:$0xff]
    %v290 = vld [vmem:[#allocation3 + $0x7f8] sm:$0xff]
    %v291 = vld [vmem:[%s1] sm:$0xf]
    %v292 = vld [vmem:[%s0] sm:$0xff]
    %v293 = vld [vmem:[%s0 + $0x8] sm:$0xff]
    %v294 = vld [vmem:[%s0 + $0x10] sm:$0xff]
    %v295 = vld [vmem:[%s0 + $0x18] sm:$0xff]
    %v296 = vld [vmem:[%s0 + $0x20] sm:$0xff]
    %v297 = vld [vmem:[%s0 + $0x28] sm:$0xff]
    %v298 = vld [vmem:[%s0 + $0x30] sm:$0xff]
    %v299 = vld [vmem:[%s0 + $0x38] sm:$0xff]
    %v300 = vld [vmem:[%s0 + $0x40] sm:$0xff]
    %v301 = vld [vmem:[%s0 + $0x48] sm:$0xff]
    %v302 = vld [vmem:[%s0 + $0x50] sm:$0xff]
    %v303 = vld [vmem:[%s0 + $0x58] sm:$0xff]
    %v304 = vld [vmem:[%s0 + $0x60] sm:$0xff]
    %v305 = vld [vmem:[%s0 + $0x68] sm:$0xff]
    %v306 = vld [vmem:[%s0 + $0x70] sm:$0xff]
    %v307 = vld [vmem:[%s0 + $0x78] sm:$0xff]
    %v308 = vld [vmem:[%s0 + $0x80] sm:$0xff]
    %v309 = vld [vmem:[%s0 + $0x88] sm:$0xff]
    %v310 = vld [vmem:[%s0 + $0x90] sm:$0xff]
    %v311 = vld [vmem:[%s0 + $0x98] sm:$0xff]
    %v312 = vld [vmem:[%s0 + $0xa0] sm:$0xff]
    %v313 = vld [vmem:[%s0 + $0xa8] sm:$0xff]
    %v314 = vld [vmem:[%s0 + $0xb0] sm:$0xff]
    %v315 = vld [vmem:[%s0 + $0xb8] sm:$0xff]
    %v316 = vld [vmem:[%s0 + $0xc0] sm:$0xff]
    %v317 = vld [vmem:[%s0 + $0xc8] sm:$0xff]
    %v318 = vld [vmem:[%s0 + $0xd0] sm:$0xff]
    %v319 = vld [vmem:[%s0 + $0xd8] sm:$0xff]
    %v320 = vld [vmem:[%s0 + $0xe0] sm:$0xff]
    %v321 = vld [vmem:[%s0 + $0xe8] sm:$0xff]
    %v322 = vld [vmem:[%s0 + $0xf0] sm:$0xff]
    %v323 = vld [vmem:[%s0 + $0xf8] sm:$0xff]
    %v324 = vld [vmem:[%s0 + $0x100] sm:$0xff]
    %v325 = vld [vmem:[%s0 + $0x108] sm:$0xff]
    %v326 = vld [vmem:[%s0 + $0x110] sm:$0xff]
    %v327 = vld [vmem:[%s0 + $0x118] sm:$0xff]
    %v328 = vld [vmem:[%s0 + $0x120] sm:$0xff]
    %v329 = vld [vmem:[%s0 + $0x128] sm:$0xff]
    %v330 = vld [vmem:[%s0 + $0x130] sm:$0xff]
    %v331 = vld [vmem:[%s0 + $0x138] sm:$0xff]
    %v332 = vld [vmem:[%s0 + $0x140] sm:$0xff]
    %v333 = vld [vmem:[%s0 + $0x148] sm:$0xff]
    %v334 = vld [vmem:[%s0 + $0x150] sm:$0xff]
    %v335 = vld [vmem:[%s0 + $0x158] sm:$0xff]
    %v336 = vld [vmem:[%s0 + $0x160] sm:$0xff]
    %v337 = vld [vmem:[%s0 + $0x168] sm:$0xff]
    %v338 = vld [vmem:[%s0 + $0x170] sm:$0xff]
    %v339 = vld [vmem:[%s0 + $0x178] sm:$0xff]
    %v340 = vld [vmem:[%s0 + $0x180] sm:$0xff]
    %v341 = vld [vmem:[%s0 + $0x188] sm:$0xff]
    %v342 = vld [vmem:[%s0 + $0x190] sm:$0xff]
    %v343 = vld [vmem:[%s0 + $0x198] sm:$0xff]
    %v344 = vld [vmem:[%s0 + $0x1a0] sm:$0xff]
    %v345 = vld [vmem:[%s0 + $0x1a8] sm:$0xff]
    %v346 = vld [vmem:[%s0 + $0x1b0] sm:$0xff]
    %v347 = vld [vmem:[%s0 + $0x1b8] sm:$0xff]
    %v348 = vld [vmem:[%s0 + $0x1c0] sm:$0xff]
    %v349 = vld [vmem:[%s0 + $0x1c8] sm:$0xff]
    %v350 = vld [vmem:[%s0 + $0x1d0] sm:$0xff]
    %v351 = vld [vmem:[%s0 + $0x1d8] sm:$0xff]
    %v352 = vld [vmem:[%s0 + $0x1e0] sm:$0xff]
    %v353 = vld [vmem:[%s0 + $0x1e8] sm:$0xff]
    %v354 = vld [vmem:[%s0 + $0x1f0] sm:$0xff]
    %v355 = vld [vmem:[%s0 + $0x1f8] sm:$0xff]
    %v357 = vlaneseq
    %v358 = vshrl.u32 %v357, 7
    %v359 = vsub.s32 0, %v358
    %v360 = vrot.slane %v291, %v359
    %v361 = vlaneseq
    %v362 = vshrl.u32 %v361, 7
    %v363 = vsub.s32 1, %v362
    %v364 = vrot.slane %v291, %v363
    %v365 = vlaneseq
    %v366 = vshrl.u32 %v365, 7
    %v367 = vsub.s32 2, %v366
    %v368 = vrot.slane %v291, %v367
    %v369 = vlaneseq
    %v370 = vshrl.u32 %v369, 7
    %v371 = vsub.s32 3, %v370
    %v372 = vrot.slane %v291, %v371
    %v377 = vmul.f32 %v35, %v360
    %v378 = vmul.f32 %v36, %v364
    %v379 = vmul.f32 %v37, %v368
    %v380 = vmul.f32 %v38, %v372
    %v381 = vmul.f32 %v39, %v360
    %v382 = vmul.f32 %v40, %v364
    %v383 = vmul.f32 %v41, %v368
    %v384 = vmul.f32 %v42, %v372
    %v385 = vmul.f32 %v43, %v360
    %v386 = vmul.f32 %v44, %v364
    %v387 = vmul.f32 %v45, %v368
    %v388 = vmul.f32 %v46, %v372
    %v389 = vmul.f32 %v47, %v360
    %v390 = vmul.f32 %v48, %v364
    %v391 = vmul.f32 %v49, %v368
    %v392 = vmul.f32 %v50, %v372
    %v393 = vmul.f32 %v51, %v360
    %v394 = vmul.f32 %v52, %v364
    %v395 = vmul.f32 %v53, %v368
    %v396 = vmul.f32 %v54, %v372
    %v397 = vmul.f32 %v55, %v360
    %v398 = vmul.f32 %v56, %v364
    %v399 = vmul.f32 %v57, %v368
    %v400 = vmul.f32 %v58, %v372
    %v401 = vmul.f32 %v59, %v360
    %v402 = vmul.f32 %v60, %v364
    %v403 = vmul.f32 %v61, %v368
    %v404 = vmul.f32 %v62, %v372
    %v405 = vmul.f32 %v63, %v360
    %v406 = vmul.f32 %v64, %v364
    %v407 = vmul.f32 %v65, %v368
    %v408 = vmul.f32 %v66, %v372
    %v409 = vmul.f32 %v67, %v360
    %v410 = vmul.f32 %v68, %v364
    %v411 = vmul.f32 %v69, %v368
    %v412 = vmul.f32 %v70, %v372
    %v413 = vmul.f32 %v71, %v360
    %v414 = vmul.f32 %v72, %v364
    %v415 = vmul.f32 %v73, %v368
    %v416 = vmul.f32 %v74, %v372
    %v417 = vmul.f32 %v75, %v360
    %v418 = vmul.f32 %v76, %v364
    %v419 = vmul.f32 %v77, %v368
    %v420 = vmul.f32 %v78, %v372
    %v421 = vmul.f32 %v79, %v360
    %v422 = vmul.f32 %v80, %v364
    %v423 = vmul.f32 %v81, %v368
    %v424 = vmul.f32 %v82, %v372
    %v425 = vmul.f32 %v83, %v360
    %v426 = vmul.f32 %v84, %v364
    %v427 = vmul.f32 %v85, %v368
    %v428 = vmul.f32 %v86, %v372
    %v429 = vmul.f32 %v87, %v360
    %v430 = vmul.f32 %v88, %v364
    %v431 = vmul.f32 %v89, %v368
    %v432 = vmul.f32 %v90, %v372
    %v433 = vmul.f32 %v91, %v360
    %v434 = vmul.f32 %v92, %v364
    %v435 = vmul.f32 %v93, %v368
    %v436 = vmul.f32 %v94, %v372
    %v437 = vmul.f32 %v95, %v360
    %v438 = vmul.f32 %v96, %v364
    %v439 = vmul.f32 %v97, %v368
    %v440 = vmul.f32 %v98, %v372
    %v441 = vmul.f32 %v99, %v360
    %v442 = vmul.f32 %v100, %v364
    %v443 = vmul.f32 %v101, %v368
    %v444 = vmul.f32 %v102, %v372
    %v445 = vmul.f32 %v103, %v360
    %v446 = vmul.f32 %v104, %v364
    %v447 = vmul.f32 %v105, %v368
    %v448 = vmul.f32 %v106, %v372
    %v449 = vmul.f32 %v107, %v360
    %v450 = vmul.f32 %v108, %v364
    %v451 = vmul.f32 %v109, %v368
    %v452 = vmul.f32 %v110, %v372
    %v453 = vmul.f32 %v111, %v360
    %v454 = vmul.f32 %v112, %v364
    %v455 = vmul.f32 %v113, %v368
    %v456 = vmul.f32 %v114, %v372
    %v457 = vmul.f32 %v115, %v360
    %v458 = vmul.f32 %v116, %v364
    %v459 = vmul.f32 %v117, %v368
    %v460 = vmul.f32 %v118, %v372
    %v461 = vmul.f32 %v119, %v360
    %v462 = vmul.f32 %v120, %v364
    %v463 = vmul.f32 %v121, %v368
    %v464 = vmul.f32 %v122, %v372
    %v465 = vmul.f32 %v123, %v360
    %v466 = vmul.f32 %v124, %v364
    %v467 = vmul.f32 %v125, %v368
    %v468 = vmul.f32 %v126, %v372
    %v469 = vmul.f32 %v127, %v360
    %v470 = vmul.f32 %v128, %v364
    %v471 = vmul.f32 %v129, %v368
    %v472 = vmul.f32 %v130, %v372
    %v473 = vmul.f32 %v131, %v360
    %v474 = vmul.f32 %v132, %v364
    %v475 = vmul.f32 %v133, %v368
    %v476 = vmul.f32 %v134, %v372
    %v477 = vmul.f32 %v135, %v360
    %v478 = vmul.f32 %v136, %v364
    %v479 = vmul.f32 %v137, %v368
    %v480 = vmul.f32 %v138, %v372
    %v481 = vmul.f32 %v139, %v360
    %v482 = vmul.f32 %v140, %v364
    %v483 = vmul.f32 %v141, %v368
    %v484 = vmul.f32 %v142, %v372
    %v485 = vmul.f32 %v143, %v360
    %v486 = vmul.f32 %v144, %v364
    %v487 = vmul.f32 %v145, %v368
    %v488 = vmul.f32 %v146, %v372
    %v489 = vmul.f32 %v147, %v360
    %v490 = vmul.f32 %v148, %v364
    %v491 = vmul.f32 %v149, %v368
    %v492 = vmul.f32 %v150, %v372
    %v493 = vmul.f32 %v151, %v360
    %v494 = vmul.f32 %v152, %v364
    %v495 = vmul.f32 %v153, %v368
    %v496 = vmul.f32 %v154, %v372
    %v497 = vmul.f32 %v155, %v360
    %v498 = vmul.f32 %v156, %v364
    %v499 = vmul.f32 %v157, %v368
    %v500 = vmul.f32 %v158, %v372
    %v501 = vmul.f32 %v159, %v360
    %v502 = vmul.f32 %v160, %v364
    %v503 = vmul.f32 %v161, %v368
    %v504 = vmul.f32 %v162, %v372
    %v505 = vmul.f32 %v163, %v360
    %v506 = vmul.f32 %v164, %v364
    %v507 = vmul.f32 %v165, %v368
    %v508 = vmul.f32 %v166, %v372
    %v509 = vmul.f32 %v167, %v360
    %v510 = vmul.f32 %v168, %v364
    %v511 = vmul.f32 %v169, %v368
    %v512 = vmul.f32 %v170, %v372
    %v513 = vmul.f32 %v171, %v360
    %v514 = vmul.f32 %v172, %v364
    %v515 = vmul.f32 %v173, %v368
    %v516 = vmul.f32 %v174, %v372
    %v517 = vmul.f32 %v175, %v360
    %v518 = vmul.f32 %v176, %v364
    %v519 = vmul.f32 %v177, %v368
    %v520 = vmul.f32 %v178, %v372
    %v521 = vmul.f32 %v179, %v360
    %v522 = vmul.f32 %v180, %v364
    %v523 = vmul.f32 %v181, %v368
    %v524 = vmul.f32 %v182, %v372
    %v525 = vmul.f32 %v183, %v360
    %v526 = vmul.f32 %v184, %v364
    %v527 = vmul.f32 %v185, %v368
    %v528 = vmul.f32 %v186, %v372
    %v529 = vmul.f32 %v187, %v360
    %v530 = vmul.f32 %v188, %v364
    %v531 = vmul.f32 %v189, %v368
    %v532 = vmul.f32 %v190, %v372
    %v533 = vmul.f32 %v191, %v360
    %v534 = vmul.f32 %v192, %v364
    %v535 = vmul.f32 %v193, %v368
    %v536 = vmul.f32 %v194, %v372
    %v537 = vmul.f32 %v195, %v360
    %v538 = vmul.f32 %v196, %v364
    %v539 = vmul.f32 %v197, %v368
    %v540 = vmul.f32 %v198, %v372
    %v541 = vmul.f32 %v199, %v360
    %v542 = vmul.f32 %v200, %v364
    %v543 = vmul.f32 %v201, %v368
    %v544 = vmul.f32 %v202, %v372
    %v545 = vmul.f32 %v203, %v360
    %v546 = vmul.f32 %v204, %v364
    %v547 = vmul.f32 %v205, %v368
    %v548 = vmul.f32 %v206, %v372
    %v549 = vmul.f32 %v207, %v360
    %v550 = vmul.f32 %v208, %v364
    %v551 = vmul.f32 %v209, %v368
    %v552 = vmul.f32 %v210, %v372
    %v553 = vmul.f32 %v211, %v360
    %v554 = vmul.f32 %v212, %v364
    %v555 = vmul.f32 %v213, %v368
    %v556 = vmul.f32 %v214, %v372
    %v557 = vmul.f32 %v215, %v360
    %v558 = vmul.f32 %v216, %v364
    %v559 = vmul.f32 %v217, %v368
    %v560 = vmul.f32 %v218, %v372
    %v561 = vmul.f32 %v219, %v360
    %v562 = vmul.f32 %v220, %v364
    %v563 = vmul.f32 %v221, %v368
    %v564 = vmul.f32 %v222, %v372
    %v565 = vmul.f32 %v223, %v360
    %v566 = vmul.f32 %v224, %v364
    %v567 = vmul.f32 %v225, %v368
    %v568 = vmul.f32 %v226, %v372
    %v569 = vmul.f32 %v227, %v360
    %v570 = vmul.f32 %v228, %v364
    %v571 = vmul.f32 %v229, %v368
    %v572 = vmul.f32 %v230, %v372
    %v573 = vmul.f32 %v231, %v360
    %v574 = vmul.f32 %v232, %v364
    %v575 = vmul.f32 %v233, %v368
    %v576 = vmul.f32 %v234, %v372
    %v577 = vmul.f32 %v235, %v360
    %v578 = vmul.f32 %v236, %v364
    %v579 = vmul.f32 %v237, %v368
    %v580 = vmul.f32 %v238, %v372
    %v581 = vmul.f32 %v239, %v360
    %v582 = vmul.f32 %v240, %v364
    %v583 = vmul.f32 %v241, %v368
    %v584 = vmul.f32 %v242, %v372
    %v585 = vmul.f32 %v243, %v360
    %v586 = vmul.f32 %v244, %v364
    %v587 = vmul.f32 %v245, %v368
    %v588 = vmul.f32 %v246, %v372
    %v589 = vmul.f32 %v247, %v360
    %v590 = vmul.f32 %v248, %v364
    %v591 = vmul.f32 %v249, %v368
    %v592 = vmul.f32 %v250, %v372
    %v593 = vmul.f32 %v251, %v360
    %v594 = vmul.f32 %v252, %v364
    %v595 = vmul.f32 %v253, %v368
    %v596 = vmul.f32 %v254, %v372
    %v597 = vmul.f32 %v255, %v360
    %v598 = vmul.f32 %v256, %v364
    %v599 = vmul.f32 %v257, %v368
    %v600 = vmul.f32 %v258, %v372
    %v601 = vmul.f32 %v259, %v360
    %v602 = vmul.f32 %v260, %v364
    %v603 = vmul.f32 %v261, %v368
    %v604 = vmul.f32 %v262, %v372
    %v605 = vmul.f32 %v263, %v360
    %v606 = vmul.f32 %v264, %v364
    %v607 = vmul.f32 %v265, %v368
    %v608 = vmul.f32 %v266, %v372
    %v609 = vmul.f32 %v267, %v360
    %v610 = vmul.f32 %v268, %v364
    %v611 = vmul.f32 %v269, %v368
    %v612 = vmul.f32 %v270, %v372
    %v613 = vmul.f32 %v271, %v360
    %v614 = vmul.f32 %v272, %v364
    %v615 = vmul.f32 %v273, %v368
    %v616 = vmul.f32 %v274, %v372
    %v617 = vmul.f32 %v275, %v360
    %v618 = vmul.f32 %v276, %v364
    %v619 = vmul.f32 %v277, %v368
    %v620 = vmul.f32 %v278, %v372
    %v621 = vmul.f32 %v279, %v360
    %v622 = vmul.f32 %v280, %v364
    %v623 = vmul.f32 %v281, %v368
    %v624 = vmul.f32 %v282, %v372
    %v625 = vmul.f32 %v283, %v360
    %v626 = vmul.f32 %v284, %v364
    %v627 = vmul.f32 %v285, %v368
    %v628 = vmul.f32 %v286, %v372
    %v629 = vmul.f32 %v287, %v360
    %v630 = vmul.f32 %v288, %v364
    %v631 = vmul.f32 %v289, %v368
    %v632 = vmul.f32 %v290, %v372
    %v633 = vadd.f32 %v377, %v378
    %v634 = vadd.f32 %v633, %v379
    %v635 = vadd.f32 %v634, %v380
    %636 = vadd.xlane.f32.xlu0 %v635
    %v637 = vpop.xlane.xlu0 %636
    %v638 = vadd.f32 %v381, %v382
    %v639 = vadd.f32 %v638, %v383
    %v640 = vadd.f32 %v639, %v384
    %641 = vadd.xlane.f32.xlu0 %v640
    %v642 = vpop.xlane.xlu0 %641
    %v643 = vadd.f32 %v385, %v386
    %v644 = vadd.f32 %v643, %v387
    %v645 = vadd.f32 %v644, %v388
    %646 = vadd.xlane.f32.xlu0 %v645
    %v647 = vpop.xlane.xlu0 %646
    %v648 = vadd.f32 %v389, %v390
    %v649 = vadd.f32 %v648, %v391
    %v650 = vadd.f32 %v649, %v392
    %651 = vadd.xlane.f32.xlu0 %v650
    %v652 = vpop.xlane.xlu0 %651
    %v653 = vadd.f32 %v393, %v394
    %v654 = vadd.f32 %v653, %v395
    %v655 = vadd.f32 %v654, %v396
    %656 = vadd.xlane.f32.xlu0 %v655
    %v657 = vpop.xlane.xlu0 %656
    %v658 = vadd.f32 %v397, %v398
    %v659 = vadd.f32 %v658, %v399
    %v660 = vadd.f32 %v659, %v400
    %661 = vadd.xlane.f32.xlu0 %v660
    %v662 = vpop.xlane.xlu0 %661
    %v663 = vadd.f32 %v401, %v402
    %v664 = vadd.f32 %v663, %v403
    %v665 = vadd.f32 %v664, %v404
    %666 = vadd.xlane.f32.xlu0 %v665
    %v667 = vpop.xlane.xlu0 %666
    %v668 = vadd.f32 %v405, %v406
    %v669 = vadd.f32 %v668, %v407
    %v670 = vadd.f32 %v669, %v408
    %671 = vadd.xlane.f32.xlu0 %v670
    %v672 = vpop.xlane.xlu0 %671
    %v673 = vadd.f32 %v409, %v410
    %v674 = vadd.f32 %v673, %v411
    %v675 = vadd.f32 %v674, %v412
    %676 = vadd.xlane.f32.xlu0 %v675
    %v677 = vpop.xlane.xlu0 %676
    %v678 = vadd.f32 %v413, %v414
    %v679 = vadd.f32 %v678, %v415
    %v680 = vadd.f32 %v679, %v416
    %681 = vadd.xlane.f32.xlu0 %v680
    %v682 = vpop.xlane.xlu0 %681
    %v683 = vadd.f32 %v417, %v418
    %v684 = vadd.f32 %v683, %v419
    %v685 = vadd.f32 %v684, %v420
    %686 = vadd.xlane.f32.xlu0 %v685
    %v687 = vpop.xlane.xlu0 %686
    %v688 = vadd.f32 %v421, %v422
    %v689 = vadd.f32 %v688, %v423
    %v690 = vadd.f32 %v689, %v424
    %691 = vadd.xlane.f32.xlu0 %v690
    %v692 = vpop.xlane.xlu0 %691
    %v693 = vadd.f32 %v425, %v426
    %v694 = vadd.f32 %v693, %v427
    %v695 = vadd.f32 %v694, %v428
    %696 = vadd.xlane.f32.xlu0 %v695
    %v697 = vpop.xlane.xlu0 %696
    %v698 = vadd.f32 %v429, %v430
    %v699 = vadd.f32 %v698, %v431
    %v700 = vadd.f32 %v699, %v432
    %701 = vadd.xlane.f32.xlu0 %v700
    %v702 = vpop.xlane.xlu0 %701
    %v703 = vadd.f32 %v433, %v434
    %v704 = vadd.f32 %v703, %v435
    %v705 = vadd.f32 %v704, %v436
    %706 = vadd.xlane.f32.xlu0 %v705
    %v707 = vpop.xlane.xlu0 %706
    %v708 = vadd.f32 %v437, %v438
    %v709 = vadd.f32 %v708, %v439
    %v710 = vadd.f32 %v709, %v440
    %711 = vadd.xlane.f32.xlu0 %v710
    %v712 = vpop.xlane.xlu0 %711
    %v713 = vadd.f32 %v441, %v442
    %v714 = vadd.f32 %v713, %v443
    %v715 = vadd.f32 %v714, %v444
    %716 = vadd.xlane.f32.xlu0 %v715
    %v717 = vpop.xlane.xlu0 %716
    %v718 = vadd.f32 %v445, %v446
    %v719 = vadd.f32 %v718, %v447
    %v720 = vadd.f32 %v719, %v448
    %721 = vadd.xlane.f32.xlu0 %v720
    %v722 = vpop.xlane.xlu0 %721
    %v723 = vadd.f32 %v449, %v450
    %v724 = vadd.f32 %v723, %v451
    %v725 = vadd.f32 %v724, %v452
    %726 = vadd.xlane.f32.xlu0 %v725
    %v727 = vpop.xlane.xlu0 %726
    %v728 = vadd.f32 %v453, %v454
    %v729 = vadd.f32 %v728, %v455
    %v730 = vadd.f32 %v729, %v456
    %731 = vadd.xlane.f32.xlu0 %v730
    %v732 = vpop.xlane.xlu0 %731
    %v733 = vadd.f32 %v457, %v458
    %v734 = vadd.f32 %v733, %v459
    %v735 = vadd.f32 %v734, %v460
    %736 = vadd.xlane.f32.xlu0 %v735
    %v737 = vpop.xlane.xlu0 %736
    %v738 = vadd.f32 %v461, %v462
    %v739 = vadd.f32 %v738, %v463
    %v740 = vadd.f32 %v739, %v464
    %741 = vadd.xlane.f32.xlu0 %v740
    %v742 = vpop.xlane.xlu0 %741
    %v743 = vadd.f32 %v465, %v466
    %v744 = vadd.f32 %v743, %v467
    %v745 = vadd.f32 %v744, %v468
    %746 = vadd.xlane.f32.xlu0 %v745
    %v747 = vpop.xlane.xlu0 %746
    %v748 = vadd.f32 %v469, %v470
    %v749 = vadd.f32 %v748, %v471
    %v750 = vadd.f32 %v749, %v472
    %751 = vadd.xlane.f32.xlu0 %v750
    %v752 = vpop.xlane.xlu0 %751
    %v753 = vadd.f32 %v473, %v474
    %v754 = vadd.f32 %v753, %v475
    %v755 = vadd.f32 %v754, %v476
    %756 = vadd.xlane.f32.xlu0 %v755
    %v757 = vpop.xlane.xlu0 %756
    %v758 = vadd.f32 %v477, %v478
    %v759 = vadd.f32 %v758, %v479
    %v760 = vadd.f32 %v759, %v480
    %761 = vadd.xlane.f32.xlu0 %v760
    %v762 = vpop.xlane.xlu0 %761
    %v763 = vadd.f32 %v481, %v482
    %v764 = vadd.f32 %v763, %v483
    %v765 = vadd.f32 %v764, %v484
    %766 = vadd.xlane.f32.xlu0 %v765
    %v767 = vpop.xlane.xlu0 %766
    %v768 = vadd.f32 %v485, %v486
    %v769 = vadd.f32 %v768, %v487
    %v770 = vadd.f32 %v769, %v488
    %771 = vadd.xlane.f32.xlu0 %v770
    %v772 = vpop.xlane.xlu0 %771
    %v773 = vadd.f32 %v489, %v490
    %v774 = vadd.f32 %v773, %v491
    %v775 = vadd.f32 %v774, %v492
    %776 = vadd.xlane.f32.xlu0 %v775
    %v777 = vpop.xlane.xlu0 %776
    %v778 = vadd.f32 %v493, %v494
    %v779 = vadd.f32 %v778, %v495
    %v780 = vadd.f32 %v779, %v496
    %781 = vadd.xlane.f32.xlu0 %v780
    %v782 = vpop.xlane.xlu0 %781
    %v783 = vadd.f32 %v497, %v498
    %v784 = vadd.f32 %v783, %v499
    %v785 = vadd.f32 %v784, %v500
    %786 = vadd.xlane.f32.xlu0 %v785
    %v787 = vpop.xlane.xlu0 %786
    %v788 = vadd.f32 %v501, %v502
    %v789 = vadd.f32 %v788, %v503
    %v790 = vadd.f32 %v789, %v504
    %791 = vadd.xlane.f32.xlu0 %v790
    %v792 = vpop.xlane.xlu0 %791
    %v793 = vadd.f32 %v505, %v506
    %v794 = vadd.f32 %v793, %v507
    %v795 = vadd.f32 %v794, %v508
    %796 = vadd.xlane.f32.xlu0 %v795
    %v797 = vpop.xlane.xlu0 %796
    %v798 = vadd.f32 %v509, %v510
    %v799 = vadd.f32 %v798, %v511
    %v800 = vadd.f32 %v799, %v512
    %801 = vadd.xlane.f32.xlu0 %v800
    %v802 = vpop.xlane.xlu0 %801
    %v803 = vadd.f32 %v513, %v514
    %v804 = vadd.f32 %v803, %v515
    %v805 = vadd.f32 %v804, %v516
    %806 = vadd.xlane.f32.xlu0 %v805
    %v807 = vpop.xlane.xlu0 %806
    %v808 = vadd.f32 %v517, %v518
    %v809 = vadd.f32 %v808, %v519
    %v810 = vadd.f32 %v809, %v520
    %811 = vadd.xlane.f32.xlu0 %v810
    %v812 = vpop.xlane.xlu0 %811
    %v813 = vadd.f32 %v521, %v522
    %v814 = vadd.f32 %v813, %v523
    %v815 = vadd.f32 %v814, %v524
    %816 = vadd.xlane.f32.xlu0 %v815
    %v817 = vpop.xlane.xlu0 %816
    %v818 = vadd.f32 %v525, %v526
    %v819 = vadd.f32 %v818, %v527
    %v820 = vadd.f32 %v819, %v528
    %821 = vadd.xlane.f32.xlu0 %v820
    %v822 = vpop.xlane.xlu0 %821
    %v823 = vadd.f32 %v529, %v530
    %v824 = vadd.f32 %v823, %v531
    %v825 = vadd.f32 %v824, %v532
    %826 = vadd.xlane.f32.xlu0 %v825
    %v827 = vpop.xlane.xlu0 %826
    %v828 = vadd.f32 %v533, %v534
    %v829 = vadd.f32 %v828, %v535
    %v830 = vadd.f32 %v829, %v536
    %831 = vadd.xlane.f32.xlu0 %v830
    %v832 = vpop.xlane.xlu0 %831
    %v833 = vadd.f32 %v537, %v538
    %v834 = vadd.f32 %v833, %v539
    %v835 = vadd.f32 %v834, %v540
    %836 = vadd.xlane.f32.xlu0 %v835
    %v837 = vpop.xlane.xlu0 %836
    %v838 = vadd.f32 %v541, %v542
    %v839 = vadd.f32 %v838, %v543
    %v840 = vadd.f32 %v839, %v544
    %841 = vadd.xlane.f32.xlu0 %v840
    %v842 = vpop.xlane.xlu0 %841
    %v843 = vadd.f32 %v545, %v546
    %v844 = vadd.f32 %v843, %v547
    %v845 = vadd.f32 %v844, %v548
    %846 = vadd.xlane.f32.xlu0 %v845
    %v847 = vpop.xlane.xlu0 %846
    %v848 = vadd.f32 %v549, %v550
    %v849 = vadd.f32 %v848, %v551
    %v850 = vadd.f32 %v849, %v552
    %851 = vadd.xlane.f32.xlu0 %v850
    %v852 = vpop.xlane.xlu0 %851
    %v853 = vadd.f32 %v553, %v554
    %v854 = vadd.f32 %v853, %v555
    %v855 = vadd.f32 %v854, %v556
    %856 = vadd.xlane.f32.xlu0 %v855
    %v857 = vpop.xlane.xlu0 %856
    %v858 = vadd.f32 %v557, %v558
    %v859 = vadd.f32 %v858, %v559
    %v860 = vadd.f32 %v859, %v560
    %861 = vadd.xlane.f32.xlu0 %v860
    %v862 = vpop.xlane.xlu0 %861
    %v863 = vadd.f32 %v561, %v562
    %v864 = vadd.f32 %v863, %v563
    %v865 = vadd.f32 %v864, %v564
    %866 = vadd.xlane.f32.xlu0 %v865
    %v867 = vpop.xlane.xlu0 %866
    %v868 = vadd.f32 %v565, %v566
    %v869 = vadd.f32 %v868, %v567
    %v870 = vadd.f32 %v869, %v568
    %871 = vadd.xlane.f32.xlu0 %v870
    %v872 = vpop.xlane.xlu0 %871
    %v873 = vadd.f32 %v569, %v570
    %v874 = vadd.f32 %v873, %v571
    %v875 = vadd.f32 %v874, %v572
    %876 = vadd.xlane.f32.xlu0 %v875
    %v877 = vpop.xlane.xlu0 %876
    %v878 = vadd.f32 %v573, %v574
    %v879 = vadd.f32 %v878, %v575
    %v880 = vadd.f32 %v879, %v576
    %881 = vadd.xlane.f32.xlu0 %v880
    %v882 = vpop.xlane.xlu0 %881
    %v883 = vadd.f32 %v577, %v578
    %v884 = vadd.f32 %v883, %v579
    %v885 = vadd.f32 %v884, %v580
    %886 = vadd.xlane.f32.xlu0 %v885
    %v887 = vpop.xlane.xlu0 %886
    %v888 = vadd.f32 %v581, %v582
    %v889 = vadd.f32 %v888, %v583
    %v890 = vadd.f32 %v889, %v584
    %891 = vadd.xlane.f32.xlu0 %v890
    %v892 = vpop.xlane.xlu0 %891
    %v893 = vadd.f32 %v585, %v586
    %v894 = vadd.f32 %v893, %v587
    %v895 = vadd.f32 %v894, %v588
    %896 = vadd.xlane.f32.xlu0 %v895
    %v897 = vpop.xlane.xlu0 %896
    %v898 = vadd.f32 %v589, %v590
    %v899 = vadd.f32 %v898, %v591
    %v900 = vadd.f32 %v899, %v592
    %901 = vadd.xlane.f32.xlu0 %v900
    %v902 = vpop.xlane.xlu0 %901
    %v903 = vadd.f32 %v593, %v594
    %v904 = vadd.f32 %v903, %v595
    %v905 = vadd.f32 %v904, %v596
    %906 = vadd.xlane.f32.xlu0 %v905
    %v907 = vpop.xlane.xlu0 %906
    %v908 = vadd.f32 %v597, %v598
    %v909 = vadd.f32 %v908, %v599
    %v910 = vadd.f32 %v909, %v600
    %911 = vadd.xlane.f32.xlu0 %v910
    %v912 = vpop.xlane.xlu0 %911
    %v913 = vadd.f32 %v601, %v602
    %v914 = vadd.f32 %v913, %v603
    %v915 = vadd.f32 %v914, %v604
    %916 = vadd.xlane.f32.xlu0 %v915
    %v917 = vpop.xlane.xlu0 %916
    %v918 = vadd.f32 %v605, %v606
    %v919 = vadd.f32 %v918, %v607
    %v920 = vadd.f32 %v919, %v608
    %921 = vadd.xlane.f32.xlu0 %v920
    %v922 = vpop.xlane.xlu0 %921
    %v923 = vadd.f32 %v609, %v610
    %v924 = vadd.f32 %v923, %v611
    %v925 = vadd.f32 %v924, %v612
    %926 = vadd.xlane.f32.xlu0 %v925
    %v927 = vpop.xlane.xlu0 %926
    %v928 = vadd.f32 %v613, %v614
    %v929 = vadd.f32 %v928, %v615
    %v930 = vadd.f32 %v929, %v616
    %931 = vadd.xlane.f32.xlu0 %v930
    %v932 = vpop.xlane.xlu0 %931
    %v933 = vadd.f32 %v617, %v618
    %v934 = vadd.f32 %v933, %v619
    %v935 = vadd.f32 %v934, %v620
    %936 = vadd.xlane.f32.xlu0 %v935
    %v937 = vpop.xlane.xlu0 %936
    %v938 = vadd.f32 %v621, %v622
    %v939 = vadd.f32 %v938, %v623
    %v940 = vadd.f32 %v939, %v624
    %941 = vadd.xlane.f32.xlu0 %v940
    %v942 = vpop.xlane.xlu0 %941
    %v943 = vadd.f32 %v625, %v626
    %v944 = vadd.f32 %v943, %v627
    %v945 = vadd.f32 %v944, %v628
    %946 = vadd.xlane.f32.xlu0 %v945
    %v947 = vpop.xlane.xlu0 %946
    %v948 = vadd.f32 %v629, %v630
    %v949 = vadd.f32 %v948, %v631
    %v950 = vadd.f32 %v949, %v632
    %951 = vadd.xlane.f32.xlu0 %v950
    %v952 = vpop.xlane.xlu0 %951
    %v953 = vld [vmem:[#allocation2] sm:$0x1]
    %v954 = vmul.f32 %v637, %v292
    %v955 = vmul.f32 %v642, %v293
    %v956 = vmul.f32 %v647, %v294
    %v957 = vmul.f32 %v652, %v295
    %v958 = vmul.f32 %v657, %v296
    %v959 = vmul.f32 %v662, %v297
    %v960 = vmul.f32 %v667, %v298
    %v961 = vmul.f32 %v672, %v299
    %v962 = vmul.f32 %v677, %v300
    %v963 = vmul.f32 %v682, %v301
    %v964 = vmul.f32 %v687, %v302
    %v965 = vmul.f32 %v692, %v303
    %v966 = vmul.f32 %v697, %v304
    %v967 = vmul.f32 %v702, %v305
    %v968 = vmul.f32 %v707, %v306
    %v969 = vmul.f32 %v712, %v307
    %v970 = vmul.f32 %v717, %v308
    %v971 = vmul.f32 %v722, %v309
    %v972 = vmul.f32 %v727, %v310
    %v973 = vmul.f32 %v732, %v311
    %v974 = vmul.f32 %v737, %v312
    %v975 = vmul.f32 %v742, %v313
    %v976 = vmul.f32 %v747, %v314
    %v977 = vmul.f32 %v752, %v315
    %v978 = vmul.f32 %v757, %v316
    %v979 = vmul.f32 %v762, %v317
    %v980 = vmul.f32 %v767, %v318
    %v981 = vmul.f32 %v772, %v319
    %v982 = vmul.f32 %v777, %v320
    %v983 = vmul.f32 %v782, %v321
    %v984 = vmul.f32 %v787, %v322
    %v985 = vmul.f32 %v792, %v323
    %v986 = vmul.f32 %v797, %v324
    %v987 = vmul.f32 %v802, %v325
    %v988 = vmul.f32 %v807, %v326
    %v989 = vmul.f32 %v812, %v327
    %v990 = vmul.f32 %v817, %v328
    %v991 = vmul.f32 %v822, %v329
    %v992 = vmul.f32 %v827, %v330
    %v993 = vmul.f32 %v832, %v331
    %v994 = vmul.f32 %v837, %v332
    %v995 = vmul.f32 %v842, %v333
    %v996 = vmul.f32 %v847, %v334
    %v997 = vmul.f32 %v852, %v335
    %v998 = vmul.f32 %v857, %v336
    %v999 = vmul.f32 %v862, %v337
    %v1000 = vmul.f32 %v867, %v338
    %v1001 = vmul.f32 %v872, %v339
    %v1002 = vmul.f32 %v877, %v340
    %v1003 = vmul.f32 %v882, %v341
    %v1004 = vmul.f32 %v887, %v342
    %v1005 = vmul.f32 %v892, %v343
    %v1006 = vmul.f32 %v897, %v344
    %v1007 = vmul.f32 %v902, %v345
    %v1008 = vmul.f32 %v907, %v346
    %v1009 = vmul.f32 %v912, %v347
    %v1010 = vmul.f32 %v917, %v348
    %v1011 = vmul.f32 %v922, %v349
    %v1012 = vmul.f32 %v927, %v350
    %v1013 = vmul.f32 %v932, %v351
    %v1014 = vmul.f32 %v937, %v352
    %v1015 = vmul.f32 %v942, %v353
    %v1016 = vmul.f32 %v947, %v354
    %v1017 = vmul.f32 %v952, %v355
    %vm1018 = vcmask 7168
    %v1019 = vsel %vm1018, %v954, 0.0
    %v1020 = vsel %vm1018, %v955, 0.0
    %v1021 = vadd.f32 %v1019, %v1020
    %v1022 = vsel %vm1018, %v956, 0.0
    %v1023 = vadd.f32 %v1021, %v1022
    %v1024 = vsel %vm1018, %v957, 0.0
    %v1025 = vadd.f32 %v1023, %v1024
    %v1026 = vsel %vm1018, %v958, 0.0
    %v1027 = vadd.f32 %v1025, %v1026
    %v1028 = vsel %vm1018, %v959, 0.0
    %v1029 = vadd.f32 %v1027, %v1028
    %v1030 = vsel %vm1018, %v960, 0.0
    %v1031 = vadd.f32 %v1029, %v1030
    %v1032 = vsel %vm1018, %v961, 0.0
    %v1033 = vadd.f32 %v1031, %v1032
    %v1034 = vsel %vm1018, %v962, 0.0
    %v1035 = vadd.f32 %v1033, %v1034
    %v1036 = vsel %vm1018, %v963, 0.0
    %v1037 = vadd.f32 %v1035, %v1036
    %v1038 = vsel %vm1018, %v964, 0.0
    %v1039 = vadd.f32 %v1037, %v1038
    %v1040 = vsel %vm1018, %v965, 0.0
    %v1041 = vadd.f32 %v1039, %v1040
    %v1042 = vsel %vm1018, %v966, 0.0
    %v1043 = vadd.f32 %v1041, %v1042
    %v1044 = vsel %vm1018, %v967, 0.0
    %v1045 = vadd.f32 %v1043, %v1044
    %v1046 = vsel %vm1018, %v968, 0.0
    %v1047 = vadd.f32 %v1045, %v1046
    %v1048 = vsel %vm1018, %v969, 0.0
    %v1049 = vadd.f32 %v1047, %v1048
    %v1050 = vsel %vm1018, %v970, 0.0
    %v1051 = vadd.f32 %v1049, %v1050
    %v1052 = vsel %vm1018, %v971, 0.0
    %v1053 = vadd.f32 %v1051, %v1052
    %v1054 = vsel %vm1018, %v972, 0.0
    %v1055 = vadd.f32 %v1053, %v1054
    %v1056 = vsel %vm1018, %v973, 0.0
    %v1057 = vadd.f32 %v1055, %v1056
    %v1058 = vsel %vm1018, %v974, 0.0
    %v1059 = vadd.f32 %v1057, %v1058
    %v1060 = vsel %vm1018, %v975, 0.0
    %v1061 = vadd.f32 %v1059, %v1060
    %v1062 = vsel %vm1018, %v976, 0.0
    %v1063 = vadd.f32 %v1061, %v1062
    %v1064 = vsel %vm1018, %v977, 0.0
    %v1065 = vadd.f32 %v1063, %v1064
    %v1066 = vsel %vm1018, %v978, 0.0
    %v1067 = vadd.f32 %v1065, %v1066
    %v1068 = vsel %vm1018, %v979, 0.0
    %v1069 = vadd.f32 %v1067, %v1068
    %v1070 = vsel %vm1018, %v980, 0.0
    %v1071 = vadd.f32 %v1069, %v1070
    %v1072 = vsel %vm1018, %v981, 0.0
    %v1073 = vadd.f32 %v1071, %v1072
    %v1074 = vsel %vm1018, %v982, 0.0
    %v1075 = vadd.f32 %v1073, %v1074
    %v1076 = vsel %vm1018, %v983, 0.0
    %v1077 = vadd.f32 %v1075, %v1076
    %v1078 = vsel %vm1018, %v984, 0.0
    %v1079 = vadd.f32 %v1077, %v1078
    %v1080 = vsel %vm1018, %v985, 0.0
    %v1081 = vadd.f32 %v1079, %v1080
    %v1082 = vsel %vm1018, %v986, 0.0
    %v1083 = vadd.f32 %v1081, %v1082
    %v1084 = vsel %vm1018, %v987, 0.0
    %v1085 = vadd.f32 %v1083, %v1084
    %v1086 = vsel %vm1018, %v988, 0.0
    %v1087 = vadd.f32 %v1085, %v1086
    %v1088 = vsel %vm1018, %v989, 0.0
    %v1089 = vadd.f32 %v1087, %v1088
    %v1090 = vsel %vm1018, %v990, 0.0
    %v1091 = vadd.f32 %v1089, %v1090
    %v1092 = vsel %vm1018, %v991, 0.0
    %v1093 = vadd.f32 %v1091, %v1092
    %v1094 = vsel %vm1018, %v992, 0.0
    %v1095 = vadd.f32 %v1093, %v1094
    %v1096 = vsel %vm1018, %v993, 0.0
    %v1097 = vadd.f32 %v1095, %v1096
    %v1098 = vsel %vm1018, %v994, 0.0
    %v1099 = vadd.f32 %v1097, %v1098
    %v1100 = vsel %vm1018, %v995, 0.0
    %v1101 = vadd.f32 %v1099, %v1100
    %v1102 = vsel %vm1018, %v996, 0.0
    %v1103 = vadd.f32 %v1101, %v1102
    %v1104 = vsel %vm1018, %v997, 0.0
    %v1105 = vadd.f32 %v1103, %v1104
    %v1106 = vsel %vm1018, %v998, 0.0
    %v1107 = vadd.f32 %v1105, %v1106
    %v1108 = vsel %vm1018, %v999, 0.0
    %v1109 = vadd.f32 %v1107, %v1108
    %v1110 = vsel %vm1018, %v1000, 0.0
    %v1111 = vadd.f32 %v1109, %v1110
    %v1112 = vsel %vm1018, %v1001, 0.0
    %v1113 = vadd.f32 %v1111, %v1112
    %v1114 = vsel %vm1018, %v1002, 0.0
    %v1115 = vadd.f32 %v1113, %v1114
    %v1116 = vsel %vm1018, %v1003, 0.0
    %v1117 = vadd.f32 %v1115, %v1116
    %v1118 = vsel %vm1018, %v1004, 0.0
    %v1119 = vadd.f32 %v1117, %v1118
    %v1120 = vsel %vm1018, %v1005, 0.0
    %v1121 = vadd.f32 %v1119, %v1120
    %v1122 = vsel %vm1018, %v1006, 0.0
    %v1123 = vadd.f32 %v1121, %v1122
    %v1124 = vsel %vm1018, %v1007, 0.0
    %v1125 = vadd.f32 %v1123, %v1124
    %v1126 = vsel %vm1018, %v1008, 0.0
    %v1127 = vadd.f32 %v1125, %v1126
    %v1128 = vsel %vm1018, %v1009, 0.0
    %v1129 = vadd.f32 %v1127, %v1128
    %v1130 = vsel %vm1018, %v1010, 0.0
    %v1131 = vadd.f32 %v1129, %v1130
    %v1132 = vsel %vm1018, %v1011, 0.0
    %v1133 = vadd.f32 %v1131, %v1132
    %v1134 = vsel %vm1018, %v1012, 0.0
    %v1135 = vadd.f32 %v1133, %v1134
    %v1136 = vsel %vm1018, %v1013, 0.0
    %v1137 = vadd.f32 %v1135, %v1136
    %v1138 = vsel %vm1018, %v1014, 0.0
    %v1139 = vadd.f32 %v1137, %v1138
    %v1140 = vsel %vm1018, %v1015, 0.0
    %v1141 = vadd.f32 %v1139, %v1140
    %v1142 = vsel %vm1018, %v1016, 0.0
    %v1143 = vadd.f32 %v1141, %v1142
    %v1144 = vsel %vm1018, %v1017, 0.0
    %v1145 = vadd.f32 %v1143, %v1144
    %1146 = vadd.xlane.f32.xlu0 %v1145
    %v1147 = vpop.xlane.xlu0 %1146
    %v1148 = vrot.slane %v1147, 4
    %v1149 = vadd.f32 %v1147, %v1148
    %v1150 = vrot.slane %v1149, 2
    %v1151 = vadd.f32 %v1149, %v1150
    %v1152 = vrot.slane %v1151, 1
    %v1153 = vadd.f32 %v1151, %v1152
    %s1154 = vtos %v1153
    %v1155 = vstv %s1154
    %v1156 = vadd.f32 %v953, %v1155
    %vm1157 = vcmask 0
    %1158 = vst.msk [vmem:[#allocation2] sm:$0x1] %vm1157, %v1156
    // Predicated region
    $region22: #{tpu_custom_call.1} parent=1 // pred_check
      %p1159 = pneg %p29
    $region23: #{tpu_custom_call.1} parent=1 // pred_check_branch
      %1161 = sbr.rel (%p1159) target = $region25
    $region24: #{tpu_custom_call.1} parent=1 // pred_region
      %v1162 = vld [vmem:[#allocation2] sm:$0x1]
      %1164 = vset.pattern.permute.xlu0 0
      %1165 = vperm.xlu0 %1164, %v1162
      %v1166 = vpop.permute.xlu0 %1165
      %v1168 = vlaneseq
      %v1169 = vshrl.u32 %v1168, 7
      %v1170 = vsub.s32 0, %v1169
      %v1171 = vrot.slane %v1166, %v1170
      %1172 = vst [vmem:[#allocation6] sm:$0x1] %v1171
    $region25: #{tpu_custom_call.1} parent=1 // pred_fallthru
      _
    // Predicated region
    $region26: #{tpu_custom_call.1} parent=1 // pred_check
      _
    $region27: #{tpu_custom_call.1} parent=1 // pred_check_branch
      %1174 = sbr.rel (0) target = $region29
    $region28: #{tpu_custom_call.1} parent=1 // pred_region
      %s1176 = ssub.s32 16, 16
      %1177 = vsyncadd [#allocation5], %s1176
      %s1179 = sshll.u32 [#allocation6], 4
      %s1180 = int_to_ptr.vmem [resolvable:$true] %s1179
      %1182 = dma.vmem_to_hbm [thread:$0]  %s1180, 16, %s3, [#allocation5]
    $region29: #{tpu_custom_call.1} parent=1 // pred_fallthru
      _
    // Predicated region
    $region30: #{tpu_custom_call.1} parent=1 // pred_check
      _
    $region31: #{tpu_custom_call.1} parent=1 // pred_check_branch
      %1184 = sbr.rel (0) target = $region33
    $region32: #{tpu_custom_call.1} parent=1 // pred_region
      %1185 = dma.done [#allocation5], 16
    $region33: #{tpu_custom_call.1} parent=1 // pred_fallthru
      _
    %1186 = vsyncpa [#allocation4], 1
    %1187 = vsyncpa [#allocation5], 1

</llo_original>
